<compile_context>
chip_gen: v6e
topology: v6e:2x2x1
jax: 0.10.0
libtpu: 0.0.40
codegen_flags: <defaults>
</compile_context>

<pallas_src>
import jax
import jax.numpy as jnp
from jax.experimental import pallas as pl
from jax.experimental.pallas import tpu as pltpu


def _swish_kernel(x_ref, o_ref):
    x = x_ref[...]
    # f32 math for numerical parity with torch; kernel is HBM-bound so free.
    xf = x.astype(jnp.float32)
    # exp and reciprocal both use the EUP slot; equivalent to jax.nn.sigmoid.
    sig = pl.reciprocal(1.0 + jnp.exp(-xf), approx=False)
    o_ref[...] = (xf * sig).astype(o_ref.dtype)


def _round_up(v: int, m: int) -> int:
    return ((v + m - 1) // m) * m


def _vmem_budget() -> tuple:
    """(block_bytes, vmem_limit_bytes) tuned per TPU generation."""
    block_bytes = 8 * 1024 * 1024           # v7x-safe default (64 MiB VMEM/TC)
    vmem_limit = 48 * 1024 * 1024
    try:
        vmem_cap = pltpu.get_tpu_info().vmem_capacity_bytes
        if vmem_cap >= 100 * 1024 * 1024:    # v5e / v6e: 128 MiB VMEM
            block_bytes = 16 * 1024 * 1024
            vmem_limit = 80 * 1024 * 1024
    except Exception:
        pass                                 # conservative defaults fit everywhere
    return block_bytes, vmem_limit


def swish(x: jax.Array, *, donate_input: bool = False) -> jax.Array:
    """Elementwise x * sigmoid(x) via a Pallas TPU kernel."""
    orig_shape = x.shape
    orig_dtype = x.dtype
    n = x.size
    if n == 0:
        return x

    itemsize = jnp.dtype(orig_dtype).itemsize
    # Sublane-packing multiple: 8 for 32-bit, 16 for 16-bit, 32 for 8-bit.
    pack = max(8, 32 // max(itemsize, 1))

    # Lane width: largest of {1024, 512, 256, 128} dividing n -> no host pad.
    w = 128
    for cand in (1024, 512, 256):
        if n % cand == 0:
            w = cand
            break

    flat = x.reshape(-1)
    n_padded = _round_up(n, w)
    needs_pad = n_padded != n
    if needs_pad:
        # Only for truly ragged flat sizes (n % 128 != 0): pad <=127 elements.
        flat = jnp.pad(flat, (0, n_padded - n))
    rows = n_padded // w
    x2 = flat.reshape(rows, w)

    block_bytes, vmem_limit = _vmem_budget()
    block_rows = max(pack, (block_bytes // (w * itemsize)) // pack * pack)

    if rows <= pack:
        tm = rows            # full-extent block for tiny inputs
    else:
        # Cap at ~half the rows so mid-size inputs give >=2 grid steps and
        # both v7x TensorCores get work; Pallas masks the ragged last block.
        tm = max(pack, min(block_rows, _round_up(pl.cdiv(rows, 2), pack)))
    grid_m = pl.cdiv(rows, tm)

    out2 = pl.pallas_call(
        _swish_kernel,
        out_shape=jax.ShapeDtypeStruct((rows, w), orig_dtype),
        grid_spec=pltpu.PrefetchScalarGridSpec(
            num_scalar_prefetch=0,
            grid=(grid_m,),
            in_specs=[pl.BlockSpec((tm, w), lambda i: (i, 0))],
            out_specs=pl.BlockSpec((tm, w), lambda i: (i, 0)),
        ),
        compiler_params=pltpu.CompilerParams(
            dimension_semantics=("parallel",),    # megacore sharding on v7x
            vmem_limit_bytes=vmem_limit,
        ),
        # Optional: halves peak HBM footprint when the caller donates x.
        input_output_aliases=({0: 0} if (donate_input and not needs_pad) else {}),
    )(x2)

    out_flat = out2.reshape(-1)
    if needs_pad:
        out_flat = out_flat[:n]
    return out_flat.reshape(orig_shape)


if __name__ == "__main__":
    key = jax.random.PRNGKey(0)
    # Small NCHW activation input consistent with the module's forward.
    x = jax.random.normal(key, (2, 4, 16, 16), dtype=jnp.float32)

    y = swish(x)
    y = jax.block_until_ready(y)

    # Reference (plain JAX) -- same semantics as torch: x * sigmoid(x)
    y_ref = x * jax.nn.sigmoid(x)
    assert y.shape == x.shape and y.dtype == x.dtype
    assert jnp.allclose(y, y_ref, atol=1e-6, rtol=1e-6)

    print("KERNEL_OK")
</pallas_src>

<mosaic_0001>
module attributes {stable_mosaic.version = 11 : i64} {
  func.func @_swish_kernel(%arg0: i32, %arg1: memref<2x1024xf32, #tpu.memory_space<vmem>>, %arg2: memref<2x1024xf32, #tpu.memory_space<vmem>>) attributes {dimension_semantics = [#tpu.dimension_semantics<parallel>], iteration_bounds = array<i64: 1>, scalar_prefetch = 0 : i64, scratch_operands = 0 : i64, tpu.core_type = #tpu.core_type<tc>, window_params = [{transform_indices = @transform_0, window_bounds = array<i64: 2, 1024>}, {transform_indices = @transform_1, window_bounds = array<i64: 2, 1024>}]} {
    %c0 = arith.constant 0 : index
    %c0_0 = arith.constant 0 : index
    %0 = vector.load %arg1[%c0, %c0_0] : memref<2x1024xf32, #tpu.memory_space<vmem>>, vector<2x1024xf32>
    %cst = arith.constant 0.000000e+00 : f32
    %1 = vector.broadcast %cst : f32 to vector<2x1024xf32>
    %2 = arith.subf %1, %0 : vector<2x1024xf32>
    %3 = math.exp %2 : vector<2x1024xf32>
    %cst_1 = arith.constant 1.000000e+00 : f32
    %4 = vector.broadcast %cst_1 : f32 to vector<2x1024xf32>
    %5 = arith.addf %4, %3 : vector<2x1024xf32>
    %6 = tpu.reciprocal %5 : vector<2x1024xf32> -> vector<2x1024xf32>
    %7 = arith.mulf %0, %6 : vector<2x1024xf32>
    %c0_2 = arith.constant 0 : index
    %c0_3 = arith.constant 0 : index
    %8 = vector.load %arg2[%c0_2, %c0_3] : memref<2x1024xf32, #tpu.memory_space<vmem>>, vector<2x1024xf32>
    tpu.vector_store %arg2[%c0_2, %c0_3], %7 {strides = array<i32>} : memref<2x1024xf32, #tpu.memory_space<vmem>>, vector<2x1024xf32>,
    return
  }
  func.func @transform_0(%arg0: i32) -> (i32, i32) {
    %c0_i32 = arith.constant 0 : i32
    %c0_i32_0 = arith.constant 0 : i32
    return %arg0, %c0_i32 : i32, i32
  }
  func.func @transform_1(%arg0: i32) -> (i32, i32) {
    %c0_i32 = arith.constant 0 : i32
    %c0_i32_0 = arith.constant 0 : i32
    return %arg0, %c0_i32 : i32, i32
  }
}

</mosaic_0001>

<llo_original>
// kernel: tpu_custom_call.1
$region0: #{tpu_custom_call.1}
  #allocation0 [shape = 'u32[]', space=smem, size = 0x4, offset = 0x4, fixed_abs, tag = 'smem constant byte address 0x4 - core index']
  #allocation1 [shape = 'u32[144,128]{1,0:T(1,128)}', space=vmem, size = 0x12000, scoped, tag = 'internal scratch']
  %s0 = inlined_call_operand.hbm [shape: f32[2,1024], index: 0, kind: input, shape index: {}]
  %s1 = inlined_call_operand.hbm [shape: f32[2,1024], index: 1, kind: output, shape index: {}]
  %s2 = sld [smem:[#allocation0]]
  $region18: #{tpu_custom_call.1} parent=0
    _
  %s4 = ssub.s32 1, %s2
  %s5 = scalar_select 0, %s4, %s2
  $region1: #{tpu_custom_call.1} parent=0
    #allocation2 [shape = 'u8[8192]{0}', space=vmem, size = 0x2000, scoped, tag = 'input window, operand 0, single buffered']
    #allocation3 [shape = 's32[1]{0}', space=sflag, size = 0x4, scoped, tag = 'scoped memory for tpu_custom_call.1']
    #allocation4 [shape = 's32[1]{0}', space=sflag, size = 0x4, scoped, tag = 'scoped memory for tpu_custom_call.1']
    #allocation5 [shape = 'u8[8192]{0}', space=vmem, size = 0x2000, scoped, tag = 'output window, operand 0, single buffered']
    %6 = vsyncpa [#allocation3], 0
    %7 = vsyncpa [#allocation4], 0
    // Predicated region
    $region2: #{tpu_custom_call.1} parent=1 // pred_check
      _
    $region3: #{tpu_custom_call.1} parent=1 // pred_check_branch
      %9 = sbr.rel (0) target = $region5
    $region4: #{tpu_custom_call.1} parent=1 // pred_region
      %s11 = ssub.s32 256, 256
      %12 = vsyncadd [#allocation3], %s11
      %s14 = sshll.u32 [#allocation2], 4
      %s15 = int_to_ptr.vmem [resolvable:$true] %s14
      %17 = dma.hbm_to_vmem [thread:$0]  %s0, 256, %s15, [#allocation3]
    $region5: #{tpu_custom_call.1} parent=1 // pred_fallthru
      _
    // Predicated region
    $region6: #{tpu_custom_call.1} parent=1 // pred_check
      _
    $region7: #{tpu_custom_call.1} parent=1 // pred_check_branch
      %19 = sbr.rel (0) target = $region9
    $region8: #{tpu_custom_call.1} parent=1 // pred_region
      %20 = dma.done [#allocation3], 256
    $region9: #{tpu_custom_call.1} parent=1 // pred_fallthru
      _
    %v21 = vld [vmem:[#allocation2] sm:$0xff]
    %v22 = vld [vmem:[#allocation2 + $0x8] sm:$0xff]
    %v23 = vsub.f32 0.0, %v21
    %v24 = vsub.f32 0.0, %v22
    %v25 = vmul.f32 %v23, 1.442695
    %v26 = vpow.pop %v25
    %v27 = vmul.f32 %v24, 1.442695
    %v28 = vpow.pop %v27
    %v29 = vadd.f32 %v26, 1.0
    %v30 = vadd.f32 %v28, 1.0
    %v31 = vrcp.pop %v29
    %v32 = vrcp.pop %v30
    %v33 = vmul.f32 %v21, %v31
    %v34 = vmul.f32 %v22, %v32
    %35 = vst [vmem:[#allocation5] sm:$0xff] %v33
    %36 = vst [vmem:[#allocation5 + $0x8] sm:$0xff] %v34
    // Predicated region
    $region10: #{tpu_custom_call.1} parent=1 // pred_check
      _
    $region11: #{tpu_custom_call.1} parent=1 // pred_check_branch
      %38 = sbr.rel (0) target = $region13
    $region12: #{tpu_custom_call.1} parent=1 // pred_region
      %s40 = ssub.s32 256, 256
      %41 = vsyncadd [#allocation4], %s40
      %s43 = sshll.u32 [#allocation5], 4
      %s44 = int_to_ptr.vmem [resolvable:$true] %s43
      %46 = dma.vmem_to_hbm [thread:$0]  %s44, 256, %s1, [#allocation4]
    $region13: #{tpu_custom_call.1} parent=1 // pred_fallthru
      _
    // Predicated region
    $region14: #{tpu_custom_call.1} parent=1 // pred_check
      _
    $region15: #{tpu_custom_call.1} parent=1 // pred_check_branch
      %48 = sbr.rel (0) target = $region17
    $region16: #{tpu_custom_call.1} parent=1 // pred_region
      %49 = dma.done [#allocation4], 256
    $region17: #{tpu_custom_call.1} parent=1 // pred_fallthru
      _
    %50 = vsyncpa [#allocation3], 1
    %51 = vsyncpa [#allocation4], 1

</llo_original>
